<compile_context>
chip_gen: v6e
topology: v6e:2x2x1
jax: 0.10.0
libtpu: 0.0.40
codegen_flags: <defaults>
</compile_context>

<pallas_src>
import functools

import jax
import jax.numpy as jnp
from jax.experimental import pallas as pl
from jax.experimental.pallas import tpu as pltpu

DELTALEARNER_EPSILON = 0.1

_TARGET_BLOCK_BYTES = 2 * 1024 * 1024  # ~2 MiB of mel per grid step (HBM-stream sweet spot)


def _delta_add_kernel(mel_ref, delta_ref, out_ref, *, eps):
    # mel_ref / out_ref: (bt, num_mel_bins, tt) block
    # delta_ref:         (1,  num_mel_bins, tt) block, broadcast over the bt axis
    m = mel_ref[...].astype(jnp.float32)
    d = delta_ref[...].astype(jnp.float32)
    out_ref[...] = (m + jnp.float32(eps) * d).astype(out_ref.dtype)


def _choose_tiles(batch, bins, frames, itemsize):
    """Pick (batch_tile, frame_tile) targeting ~_TARGET_BLOCK_BYTES mel blocks."""
    elems_target = max(1, _TARGET_BLOCK_BYTES // itemsize)
    if frames >= 128:
        # Frame tile: multiple of 128 (lane-dense, legal window into max_frames).
        tt_budget = max(128, ((elems_target // bins) // 128) * 128)
        tt = min((frames // 128) * 128, tt_budget)
    else:
        # Tiny frame counts: use the full (sub-128) lane extent.
        tt = frames
    bt = max(1, min(batch, elems_target // (bins * tt)))
    return bt, tt


def delta_learner_forward(mel, delta, eps=DELTALEARNER_EPSILON):
    """mel: (B, num_mel_bins, frames); delta: (1, num_mel_bins, max_frames)."""
    batch, bins, frames = mel.shape
    if delta.shape[0] != 1 or delta.shape[1] != bins:
        raise ValueError("delta must have shape (1, num_mel_bins, max_frames)")
    max_frames = delta.shape[2]
    if frames > max_frames:
        raise ValueError("Input frames exceed max_frames")

    bt, tt = _choose_tiles(batch, bins, frames, mel.dtype.itemsize)

    if frames >= 128:
        # Window the full parameter via BlockSpec; no extra XLA slice/copy.
        delta_in = delta
    else:
        # Fallback: frame tile == frames (full-dim block); delta must match that
        # full extent, so slice once (tiny, B-independent copy).
        delta_in = delta[:, :, :frames]

    grid_t = pl.cdiv(frames, tt)
    grid_b = pl.cdiv(batch, bt)

    kernel = functools.partial(_delta_add_kernel, eps=eps)

    return pl.pallas_call(
        kernel,
        out_shape=jax.ShapeDtypeStruct((batch, bins, frames), mel.dtype),
        grid_spec=pltpu.PrefetchScalarGridSpec(
            num_scalar_prefetch=0,
            # Frame tiles OUTER (slow), batch tiles INNER (fast): delta's block
            # index depends only on t, so the resident delta block is reused
            # across the whole inner batch sweep instead of being re-DMA'd.
            grid=(grid_t, grid_b),
            in_specs=[
                pl.BlockSpec((bt, bins, tt), lambda t, b: (b, 0, t)),
                pl.BlockSpec((1, bins, tt), lambda t, b: (0, 0, t)),
            ],
            out_specs=pl.BlockSpec((bt, bins, tt), lambda t, b: (b, 0, t)),
        ),
        compiler_params=pltpu.CompilerParams(
            # Independent output tiles on both axes -> megacore can shard either.
            dimension_semantics=("parallel", "parallel"),
            # ~2 MiB blocks, double-buffered in/out + delta => ~10-12 MiB peak;
            # explicit limit clears v5e's 16 MiB default, safe on v7x's 64 MiB.
            vmem_limit_bytes=48 * 1024 * 1024,
        ),
    )(mel, delta_in)


def _reference(mel, delta, eps):
    frames = mel.shape[2]
    return mel + eps * jnp.broadcast_to(delta[:, :, :frames], mel.shape)


if __name__ == "__main__":
    key = jax.random.PRNGKey(0)
    k_mel, k_delta, k_mel2, k_mel3 = jax.random.split(key, 4)

    num_mel_bins = 128
    max_frames = 512

    # nn.Parameter(torch.zeros(...)) in the module; use small random values here
    # so the broadcast-add is actually exercised.
    delta = 0.01 * jax.random.normal(
        k_delta, (1, num_mel_bins, max_frames), dtype=jnp.float32
    )

    # Case 1: aligned frames (multiple of 128), batch folded into the block.
    mel1 = jax.random.normal(k_mel, (2, num_mel_bins, 256), dtype=jnp.float32)
    out1 = jax.block_until_ready(delta_learner_forward(mel1, delta))
    assert out1.shape == mel1.shape
    assert jnp.allclose(out1, _reference(mel1, delta, DELTALEARNER_EPSILON), atol=1e-6, rtol=1e-6)

    # Case 2: frames not a multiple of 128 (edge-masked frame tile, delta windowed).
    mel2 = jax.random.normal(k_mel2, (3, num_mel_bins, 200), dtype=jnp.float32)
    out2 = jax.block_until_ready(delta_learner_forward(mel2, delta))
    assert out2.shape == mel2.shape
    assert jnp.allclose(out2, _reference(mel2, delta, DELTALEARNER_EPSILON), atol=1e-6, rtol=1e-6)

    # Case 3: frames < 128 (fallback path: full-dim lane block + sliced delta).
    mel3 = jax.random.normal(k_mel3, (2, num_mel_bins, 96), dtype=jnp.float32)
    out3 = jax.block_until_ready(delta_learner_forward(mel3, delta))
    assert out3.shape == mel3.shape
    assert jnp.allclose(out3, _reference(mel3, delta, DELTALEARNER_EPSILON), atol=1e-6, rtol=1e-6)

    print("KERNEL_OK")
</pallas_src>

<mosaic_0001>
module attributes {stable_mosaic.version = 11 : i64} {
  func.func @_delta_add_kernel(%arg0: i32, %arg1: i32, %arg2: memref<2x128x256xf32, #tpu.memory_space<vmem>>, %arg3: memref<1x128x256xf32, #tpu.memory_space<vmem>>, %arg4: memref<2x128x256xf32, #tpu.memory_space<vmem>>) attributes {dimension_semantics = [#tpu.dimension_semantics<parallel>, #tpu.dimension_semantics<parallel>], iteration_bounds = array<i64: 1, 1>, scalar_prefetch = 0 : i64, scratch_operands = 0 : i64, tpu.core_type = #tpu.core_type<tc>, window_params = [{transform_indices = @transform_0, window_bounds = array<i64: 2, 128, 256>}, {transform_indices = @transform_1, window_bounds = array<i64: 1, 128, 256>}, {transform_indices = @transform_2, window_bounds = array<i64: 2, 128, 256>}]} {
    %c0 = arith.constant 0 : index
    %c0_0 = arith.constant 0 : index
    %c0_1 = arith.constant 0 : index
    %0 = vector.load %arg2[%c0, %c0_0, %c0_1] : memref<2x128x256xf32, #tpu.memory_space<vmem>>, vector<2x128x256xf32>
    %c0_2 = arith.constant 0 : index
    %c0_3 = arith.constant 0 : index
    %c0_4 = arith.constant 0 : index
    %1 = vector.load %arg3[%c0_2, %c0_3, %c0_4] : memref<1x128x256xf32, #tpu.memory_space<vmem>>, vector<1x128x256xf32>
    %cst = arith.constant 1.000000e-01 : f32
    %2 = vector.broadcast %cst : f32 to vector<1x128x256xf32>
    %3 = arith.mulf %2, %1 : vector<1x128x256xf32>
    %4 = vector.broadcast %3 : vector<1x128x256xf32> to vector<2x128x256xf32>
    %5 = arith.addf %0, %4 : vector<2x128x256xf32>
    %c0_5 = arith.constant 0 : index
    %c0_6 = arith.constant 0 : index
    %c0_7 = arith.constant 0 : index
    %6 = vector.load %arg4[%c0_5, %c0_6, %c0_7] : memref<2x128x256xf32, #tpu.memory_space<vmem>>, vector<2x128x256xf32>
    tpu.vector_store %arg4[%c0_5, %c0_6, %c0_7], %5 {strides = array<i32>} : memref<2x128x256xf32, #tpu.memory_space<vmem>>, vector<2x128x256xf32>,
    return
  }
  func.func @transform_0(%arg0: i32, %arg1: i32) -> (i32, i32, i32) {
    %c0_i32 = arith.constant 0 : i32
    %c0_i32_0 = arith.constant 0 : i32
    return %arg1, %c0_i32, %arg0 : i32, i32, i32
  }
  func.func @transform_1(%arg0: i32, %arg1: i32) -> (i32, i32, i32) {
    %c0_i32 = arith.constant 0 : i32
    %c0_i32_0 = arith.constant 0 : i32
    %c0_i32_1 = arith.constant 0 : i32
    return %c0_i32, %c0_i32_0, %arg0 : i32, i32, i32
  }
  func.func @transform_2(%arg0: i32, %arg1: i32) -> (i32, i32, i32) {
    %c0_i32 = arith.constant 0 : i32
    %c0_i32_0 = arith.constant 0 : i32
    return %arg1, %c0_i32, %arg0 : i32, i32, i32
  }
}

</mosaic_0001>

<llo_original>
// kernel: tpu_custom_call.1
$region0: #{tpu_custom_call.1}
  #allocation0 [shape = 'u32[]', space=smem, size = 0x4, offset = 0x4, fixed_abs, tag = 'smem constant byte address 0x4 - core index']
  #allocation1 [shape = 'u32[144,128]{1,0:T(1,128)}', space=vmem, size = 0x12000, scoped, tag = 'internal scratch']
  %s0 = inlined_call_operand.hbm [shape: f32[2,128,256], index: 0, kind: input, shape index: {}]
  %s1 = inlined_call_operand.hbm [shape: f32[1,128,512], index: 1, kind: input, shape index: {}]
  %s2 = inlined_call_operand.hbm [shape: f32[2,128,256], index: 2, kind: output, shape index: {}]
  %s3 = sld [smem:[#allocation0]]
  $region26: #{tpu_custom_call.1} parent=0
    _
  %s5 = ssub.s32 1, %s3
  %s6 = scalar_select 0, %s5, %s3
  $region1: #{tpu_custom_call.1} parent=0
    #allocation2 [shape = 'u8[262144]{0}', space=vmem, size = 0x40000, scoped, tag = 'input window, operand 0, single buffered']
    #allocation3 [shape = 's32[1]{0}', space=sflag, size = 0x4, scoped, tag = 'scoped memory for tpu_custom_call.1']
    #allocation4 [shape = 's32[1]{0}', space=sflag, size = 0x4, scoped, tag = 'scoped memory for tpu_custom_call.1']
    #allocation5 [shape = 'u8[131072]{0}', space=vmem, size = 0x20000, scoped, tag = 'input window, operand 1, single buffered']
    #allocation6 [shape = 's32[1]{0}', space=sflag, size = 0x4, scoped, tag = 'scoped memory for tpu_custom_call.1']
    #allocation7 [shape = 'u8[262144]{0}', space=vmem, size = 0x40000, scoped, tag = 'output window, operand 0, single buffered']
    %7 = vsyncpa [#allocation3], 0
    %8 = vsyncpa [#allocation6], 0
    %9 = vsyncpa [#allocation4], 0
    // Predicated region
    $region2: #{tpu_custom_call.1} parent=1 // pred_check
      _
    $region3: #{tpu_custom_call.1} parent=1 // pred_check_branch
      %11 = sbr.rel (0) target = $region5
    $region4: #{tpu_custom_call.1} parent=1 // pred_region
      %s13 = ssub.s32 8192, 8192
      %14 = vsyncadd [#allocation3], %s13
      %s15 = sshll.u32 [#allocation2], 4
      %s16 = int_to_ptr.vmem [resolvable:$true] %s15
      %21 = dma.hbm_to_vmem [thread:$0]  %s0, 8192, %s16, [#allocation3], 256, 256, 16
    $region5: #{tpu_custom_call.1} parent=1 // pred_fallthru
      _
    // Predicated region
    $region6: #{tpu_custom_call.1} parent=1 // pred_check
      _
    $region7: #{tpu_custom_call.1} parent=1 // pred_check_branch
      %23 = sbr.rel (0) target = $region9
    $region8: #{tpu_custom_call.1} parent=1 // pred_region
      %s25 = ssub.s32 4096, 4096
      %26 = vsyncadd [#allocation6], %s25
      %s27 = sshll.u32 [#allocation5], 4
      %s28 = int_to_ptr.vmem [resolvable:$true] %s27
      %33 = dma.hbm_to_vmem [thread:$0]  %s1, 4096, %s28, [#allocation6], 512, 256, 16
    $region9: #{tpu_custom_call.1} parent=1 // pred_fallthru
      _
    // Predicated region
    $region10: #{tpu_custom_call.1} parent=1 // pred_check
      _
    $region11: #{tpu_custom_call.1} parent=1 // pred_check_branch
      %35 = sbr.rel (0) target = $region13
    $region12: #{tpu_custom_call.1} parent=1 // pred_region
      %36 = dma.done [#allocation3], 8192
    $region13: #{tpu_custom_call.1} parent=1 // pred_fallthru
      _
    // Predicated region
    $region14: #{tpu_custom_call.1} parent=1 // pred_check
      _
    $region15: #{tpu_custom_call.1} parent=1 // pred_check_branch
      %38 = sbr.rel (0) target = $region17
    $region16: #{tpu_custom_call.1} parent=1 // pred_region
      %39 = dma.done [#allocation6], 4096
    $region17: #{tpu_custom_call.1} parent=1 // pred_fallthru
      _
    %v40 = vld [vmem:[#allocation2] sm:$0xff]
    %v41 = vld [vmem:[#allocation2 + $0x8] sm:$0xff]
    %v42 = vld [vmem:[#allocation2 + $0x10] sm:$0xff]
    %v43 = vld [vmem:[#allocation2 + $0x18] sm:$0xff]
    %v44 = vld [vmem:[#allocation2 + $0x20] sm:$0xff]
    %v45 = vld [vmem:[#allocation2 + $0x28] sm:$0xff]
    %v46 = vld [vmem:[#allocation2 + $0x30] sm:$0xff]
    %v47 = vld [vmem:[#allocation2 + $0x38] sm:$0xff]
    %v48 = vld [vmem:[#allocation2 + $0x40] sm:$0xff]
    %v49 = vld [vmem:[#allocation2 + $0x48] sm:$0xff]
    %v50 = vld [vmem:[#allocation2 + $0x50] sm:$0xff]
    %v51 = vld [vmem:[#allocation2 + $0x58] sm:$0xff]
    %v52 = vld [vmem:[#allocation2 + $0x60] sm:$0xff]
    %v53 = vld [vmem:[#allocation2 + $0x68] sm:$0xff]
    %v54 = vld [vmem:[#allocation2 + $0x70] sm:$0xff]
    %v55 = vld [vmem:[#allocation2 + $0x78] sm:$0xff]
    %v56 = vld [vmem:[#allocation2 + $0x80] sm:$0xff]
    %v57 = vld [vmem:[#allocation2 + $0x88] sm:$0xff]
    %v58 = vld [vmem:[#allocation2 + $0x90] sm:$0xff]
    %v59 = vld [vmem:[#allocation2 + $0x98] sm:$0xff]
    %v60 = vld [vmem:[#allocation2 + $0xa0] sm:$0xff]
    %v61 = vld [vmem:[#allocation2 + $0xa8] sm:$0xff]
    %v62 = vld [vmem:[#allocation2 + $0xb0] sm:$0xff]
    %v63 = vld [vmem:[#allocation2 + $0xb8] sm:$0xff]
    %v64 = vld [vmem:[#allocation2 + $0xc0] sm:$0xff]
    %v65 = vld [vmem:[#allocation2 + $0xc8] sm:$0xff]
    %v66 = vld [vmem:[#allocation2 + $0xd0] sm:$0xff]
    %v67 = vld [vmem:[#allocation2 + $0xd8] sm:$0xff]
    %v68 = vld [vmem:[#allocation2 + $0xe0] sm:$0xff]
    %v69 = vld [vmem:[#allocation2 + $0xe8] sm:$0xff]
    %v70 = vld [vmem:[#allocation2 + $0xf0] sm:$0xff]
    %v71 = vld [vmem:[#allocation2 + $0xf8] sm:$0xff]
    %v72 = vld [vmem:[#allocation2 + $0x100] sm:$0xff]
    %v73 = vld [vmem:[#allocation2 + $0x108] sm:$0xff]
    %v74 = vld [vmem:[#allocation2 + $0x110] sm:$0xff]
    %v75 = vld [vmem:[#allocation2 + $0x118] sm:$0xff]
    %v76 = vld [vmem:[#allocation2 + $0x120] sm:$0xff]
    %v77 = vld [vmem:[#allocation2 + $0x128] sm:$0xff]
    %v78 = vld [vmem:[#allocation2 + $0x130] sm:$0xff]
    %v79 = vld [vmem:[#allocation2 + $0x138] sm:$0xff]
    %v80 = vld [vmem:[#allocation2 + $0x140] sm:$0xff]
    %v81 = vld [vmem:[#allocation2 + $0x148] sm:$0xff]
    %v82 = vld [vmem:[#allocation2 + $0x150] sm:$0xff]
    %v83 = vld [vmem:[#allocation2 + $0x158] sm:$0xff]
    %v84 = vld [vmem:[#allocation2 + $0x160] sm:$0xff]
    %v85 = vld [vmem:[#allocation2 + $0x168] sm:$0xff]
    %v86 = vld [vmem:[#allocation2 + $0x170] sm:$0xff]
    %v87 = vld [vmem:[#allocation2 + $0x178] sm:$0xff]
    %v88 = vld [vmem:[#allocation2 + $0x180] sm:$0xff]
    %v89 = vld [vmem:[#allocation2 + $0x188] sm:$0xff]
    %v90 = vld [vmem:[#allocation2 + $0x190] sm:$0xff]
    %v91 = vld [vmem:[#allocation2 + $0x198] sm:$0xff]
    %v92 = vld [vmem:[#allocation2 + $0x1a0] sm:$0xff]
    %v93 = vld [vmem:[#allocation2 + $0x1a8] sm:$0xff]
    %v94 = vld [vmem:[#allocation2 + $0x1b0] sm:$0xff]
    %v95 = vld [vmem:[#allocation2 + $0x1b8] sm:$0xff]
    %v96 = vld [vmem:[#allocation2 + $0x1c0] sm:$0xff]
    %v97 = vld [vmem:[#allocation2 + $0x1c8] sm:$0xff]
    %v98 = vld [vmem:[#allocation2 + $0x1d0] sm:$0xff]
    %v99 = vld [vmem:[#allocation2 + $0x1d8] sm:$0xff]
    %v100 = vld [vmem:[#allocation2 + $0x1e0] sm:$0xff]
    %v101 = vld [vmem:[#allocation2 + $0x1e8] sm:$0xff]
    %v102 = vld [vmem:[#allocation2 + $0x1f0] sm:$0xff]
    %v103 = vld [vmem:[#allocation2 + $0x1f8] sm:$0xff]
    %v104 = vld [vmem:[#allocation5] sm:$0xff]
    %v105 = vld [vmem:[#allocation5 + $0x8] sm:$0xff]
    %v106 = vld [vmem:[#allocation5 + $0x10] sm:$0xff]
    %v107 = vld [vmem:[#allocation5 + $0x18] sm:$0xff]
    %v108 = vld [vmem:[#allocation5 + $0x20] sm:$0xff]
    %v109 = vld [vmem:[#allocation5 + $0x28] sm:$0xff]
    %v110 = vld [vmem:[#allocation5 + $0x30] sm:$0xff]
    %v111 = vld [vmem:[#allocation5 + $0x38] sm:$0xff]
    %v112 = vld [vmem:[#allocation5 + $0x40] sm:$0xff]
    %v113 = vld [vmem:[#allocation5 + $0x48] sm:$0xff]
    %v114 = vld [vmem:[#allocation5 + $0x50] sm:$0xff]
    %v115 = vld [vmem:[#allocation5 + $0x58] sm:$0xff]
    %v116 = vld [vmem:[#allocation5 + $0x60] sm:$0xff]
    %v117 = vld [vmem:[#allocation5 + $0x68] sm:$0xff]
    %v118 = vld [vmem:[#allocation5 + $0x70] sm:$0xff]
    %v119 = vld [vmem:[#allocation5 + $0x78] sm:$0xff]
    %v120 = vld [vmem:[#allocation5 + $0x80] sm:$0xff]
    %v121 = vld [vmem:[#allocation5 + $0x88] sm:$0xff]
    %v122 = vld [vmem:[#allocation5 + $0x90] sm:$0xff]
    %v123 = vld [vmem:[#allocation5 + $0x98] sm:$0xff]
    %v124 = vld [vmem:[#allocation5 + $0xa0] sm:$0xff]
    %v125 = vld [vmem:[#allocation5 + $0xa8] sm:$0xff]
    %v126 = vld [vmem:[#allocation5 + $0xb0] sm:$0xff]
    %v127 = vld [vmem:[#allocation5 + $0xb8] sm:$0xff]
    %v128 = vld [vmem:[#allocation5 + $0xc0] sm:$0xff]
    %v129 = vld [vmem:[#allocation5 + $0xc8] sm:$0xff]
    %v130 = vld [vmem:[#allocation5 + $0xd0] sm:$0xff]
    %v131 = vld [vmem:[#allocation5 + $0xd8] sm:$0xff]
    %v132 = vld [vmem:[#allocation5 + $0xe0] sm:$0xff]
    %v133 = vld [vmem:[#allocation5 + $0xe8] sm:$0xff]
    %v134 = vld [vmem:[#allocation5 + $0xf0] sm:$0xff]
    %v135 = vld [vmem:[#allocation5 + $0xf8] sm:$0xff]
    %v136 = vmul.f32 %v104, 0.1
    %v137 = vmul.f32 %v105, 0.1
    %v138 = vmul.f32 %v106, 0.1
    %v139 = vmul.f32 %v107, 0.1
    %v140 = vmul.f32 %v108, 0.1
    %v141 = vmul.f32 %v109, 0.1
    %v142 = vmul.f32 %v110, 0.1
    %v143 = vmul.f32 %v111, 0.1
    %v144 = vmul.f32 %v112, 0.1
    %v145 = vmul.f32 %v113, 0.1
    %v146 = vmul.f32 %v114, 0.1
    %v147 = vmul.f32 %v115, 0.1
    %v148 = vmul.f32 %v116, 0.1
    %v149 = vmul.f32 %v117, 0.1
    %v150 = vmul.f32 %v118, 0.1
    %v151 = vmul.f32 %v119, 0.1
    %v152 = vmul.f32 %v120, 0.1
    %v153 = vmul.f32 %v121, 0.1
    %v154 = vmul.f32 %v122, 0.1
    %v155 = vmul.f32 %v123, 0.1
    %v156 = vmul.f32 %v124, 0.1
    %v157 = vmul.f32 %v125, 0.1
    %v158 = vmul.f32 %v126, 0.1
    %v159 = vmul.f32 %v127, 0.1
    %v160 = vmul.f32 %v128, 0.1
    %v161 = vmul.f32 %v129, 0.1
    %v162 = vmul.f32 %v130, 0.1
    %v163 = vmul.f32 %v131, 0.1
    %v164 = vmul.f32 %v132, 0.1
    %v165 = vmul.f32 %v133, 0.1
    %v166 = vmul.f32 %v134, 0.1
    %v167 = vmul.f32 %v135, 0.1
    %v168 = vadd.f32 %v40, %v136
    %v169 = vadd.f32 %v41, %v137
    %v170 = vadd.f32 %v42, %v138
    %v171 = vadd.f32 %v43, %v139
    %v172 = vadd.f32 %v44, %v140
    %v173 = vadd.f32 %v45, %v141
    %v174 = vadd.f32 %v46, %v142
    %v175 = vadd.f32 %v47, %v143
    %v176 = vadd.f32 %v48, %v144
    %v177 = vadd.f32 %v49, %v145
    %v178 = vadd.f32 %v50, %v146
    %v179 = vadd.f32 %v51, %v147
    %v180 = vadd.f32 %v52, %v148
    %v181 = vadd.f32 %v53, %v149
    %v182 = vadd.f32 %v54, %v150
    %v183 = vadd.f32 %v55, %v151
    %v184 = vadd.f32 %v56, %v152
    %v185 = vadd.f32 %v57, %v153
    %v186 = vadd.f32 %v58, %v154
    %v187 = vadd.f32 %v59, %v155
    %v188 = vadd.f32 %v60, %v156
    %v189 = vadd.f32 %v61, %v157
    %v190 = vadd.f32 %v62, %v158
    %v191 = vadd.f32 %v63, %v159
    %v192 = vadd.f32 %v64, %v160
    %v193 = vadd.f32 %v65, %v161
    %v194 = vadd.f32 %v66, %v162
    %v195 = vadd.f32 %v67, %v163
    %v196 = vadd.f32 %v68, %v164
    %v197 = vadd.f32 %v69, %v165
    %v198 = vadd.f32 %v70, %v166
    %v199 = vadd.f32 %v71, %v167
    %v200 = vadd.f32 %v72, %v136
    %v201 = vadd.f32 %v73, %v137
    %v202 = vadd.f32 %v74, %v138
    %v203 = vadd.f32 %v75, %v139
    %v204 = vadd.f32 %v76, %v140
    %v205 = vadd.f32 %v77, %v141
    %v206 = vadd.f32 %v78, %v142
    %v207 = vadd.f32 %v79, %v143
    %v208 = vadd.f32 %v80, %v144
    %v209 = vadd.f32 %v81, %v145
    %v210 = vadd.f32 %v82, %v146
    %v211 = vadd.f32 %v83, %v147
    %v212 = vadd.f32 %v84, %v148
    %v213 = vadd.f32 %v85, %v149
    %v214 = vadd.f32 %v86, %v150
    %v215 = vadd.f32 %v87, %v151
    %v216 = vadd.f32 %v88, %v152
    %v217 = vadd.f32 %v89, %v153
    %v218 = vadd.f32 %v90, %v154
    %v219 = vadd.f32 %v91, %v155
    %v220 = vadd.f32 %v92, %v156
    %v221 = vadd.f32 %v93, %v157
    %v222 = vadd.f32 %v94, %v158
    %v223 = vadd.f32 %v95, %v159
    %v224 = vadd.f32 %v96, %v160
    %v225 = vadd.f32 %v97, %v161
    %v226 = vadd.f32 %v98, %v162
    %v227 = vadd.f32 %v99, %v163
    %v228 = vadd.f32 %v100, %v164
    %v229 = vadd.f32 %v101, %v165
    %v230 = vadd.f32 %v102, %v166
    %v231 = vadd.f32 %v103, %v167
    %232 = vst [vmem:[#allocation7] sm:$0xff] %v168
    %233 = vst [vmem:[#allocation7 + $0x8] sm:$0xff] %v169
    %234 = vst [vmem:[#allocation7 + $0x10] sm:$0xff] %v170
    %235 = vst [vmem:[#allocation7 + $0x18] sm:$0xff] %v171
    %236 = vst [vmem:[#allocation7 + $0x20] sm:$0xff] %v172
    %237 = vst [vmem:[#allocation7 + $0x28] sm:$0xff] %v173
    %238 = vst [vmem:[#allocation7 + $0x30] sm:$0xff] %v174
    %239 = vst [vmem:[#allocation7 + $0x38] sm:$0xff] %v175
    %240 = vst [vmem:[#allocation7 + $0x40] sm:$0xff] %v176
    %241 = vst [vmem:[#allocation7 + $0x48] sm:$0xff] %v177
    %242 = vst [vmem:[#allocation7 + $0x50] sm:$0xff] %v178
    %243 = vst [vmem:[#allocation7 + $0x58] sm:$0xff] %v179
    %244 = vst [vmem:[#allocation7 + $0x60] sm:$0xff] %v180
    %245 = vst [vmem:[#allocation7 + $0x68] sm:$0xff] %v181
    %246 = vst [vmem:[#allocation7 + $0x70] sm:$0xff] %v182
    %247 = vst [vmem:[#allocation7 + $0x78] sm:$0xff] %v183
    %248 = vst [vmem:[#allocation7 + $0x80] sm:$0xff] %v184
    %249 = vst [vmem:[#allocation7 + $0x88] sm:$0xff] %v185
    %250 = vst [vmem:[#allocation7 + $0x90] sm:$0xff] %v186
    %251 = vst [vmem:[#allocation7 + $0x98] sm:$0xff] %v187
    %252 = vst [vmem:[#allocation7 + $0xa0] sm:$0xff] %v188
    %253 = vst [vmem:[#allocation7 + $0xa8] sm:$0xff] %v189
    %254 = vst [vmem:[#allocation7 + $0xb0] sm:$0xff] %v190
    %255 = vst [vmem:[#allocation7 + $0xb8] sm:$0xff] %v191
    %256 = vst [vmem:[#allocation7 + $0xc0] sm:$0xff] %v192
    %257 = vst [vmem:[#allocation7 + $0xc8] sm:$0xff] %v193
    %258 = vst [vmem:[#allocation7 + $0xd0] sm:$0xff] %v194
    %259 = vst [vmem:[#allocation7 + $0xd8] sm:$0xff] %v195
    %260 = vst [vmem:[#allocation7 + $0xe0] sm:$0xff] %v196
    %261 = vst [vmem:[#allocation7 + $0xe8] sm:$0xff] %v197
    %262 = vst [vmem:[#allocation7 + $0xf0] sm:$0xff] %v198
    %263 = vst [vmem:[#allocation7 + $0xf8] sm:$0xff] %v199
    %264 = vst [vmem:[#allocation7 + $0x100] sm:$0xff] %v200
    %265 = vst [vmem:[#allocation7 + $0x108] sm:$0xff] %v201
    %266 = vst [vmem:[#allocation7 + $0x110] sm:$0xff] %v202
    %267 = vst [vmem:[#allocation7 + $0x118] sm:$0xff] %v203
    %268 = vst [vmem:[#allocation7 + $0x120] sm:$0xff] %v204
    %269 = vst [vmem:[#allocation7 + $0x128] sm:$0xff] %v205
    %270 = vst [vmem:[#allocation7 + $0x130] sm:$0xff] %v206
    %271 = vst [vmem:[#allocation7 + $0x138] sm:$0xff] %v207
    %272 = vst [vmem:[#allocation7 + $0x140] sm:$0xff] %v208
    %273 = vst [vmem:[#allocation7 + $0x148] sm:$0xff] %v209
    %274 = vst [vmem:[#allocation7 + $0x150] sm:$0xff] %v210
    %275 = vst [vmem:[#allocation7 + $0x158] sm:$0xff] %v211
    %276 = vst [vmem:[#allocation7 + $0x160] sm:$0xff] %v212
    %277 = vst [vmem:[#allocation7 + $0x168] sm:$0xff] %v213
    %278 = vst [vmem:[#allocation7 + $0x170] sm:$0xff] %v214
    %279 = vst [vmem:[#allocation7 + $0x178] sm:$0xff] %v215
    %280 = vst [vmem:[#allocation7 + $0x180] sm:$0xff] %v216
    %281 = vst [vmem:[#allocation7 + $0x188] sm:$0xff] %v217
    %282 = vst [vmem:[#allocation7 + $0x190] sm:$0xff] %v218
    %283 = vst [vmem:[#allocation7 + $0x198] sm:$0xff] %v219
    %284 = vst [vmem:[#allocation7 + $0x1a0] sm:$0xff] %v220
    %285 = vst [vmem:[#allocation7 + $0x1a8] sm:$0xff] %v221
    %286 = vst [vmem:[#allocation7 + $0x1b0] sm:$0xff] %v222
    %287 = vst [vmem:[#allocation7 + $0x1b8] sm:$0xff] %v223
    %288 = vst [vmem:[#allocation7 + $0x1c0] sm:$0xff] %v224
    %289 = vst [vmem:[#allocation7 + $0x1c8] sm:$0xff] %v225
    %290 = vst [vmem:[#allocation7 + $0x1d0] sm:$0xff] %v226
    %291 = vst [vmem:[#allocation7 + $0x1d8] sm:$0xff] %v227
    %292 = vst [vmem:[#allocation7 + $0x1e0] sm:$0xff] %v228
    %293 = vst [vmem:[#allocation7 + $0x1e8] sm:$0xff] %v229
    %294 = vst [vmem:[#allocation7 + $0x1f0] sm:$0xff] %v230
    %295 = vst [vmem:[#allocation7 + $0x1f8] sm:$0xff] %v231
    // Predicated region
    $region18: #{tpu_custom_call.1} parent=1 // pred_check
      _
    $region19: #{tpu_custom_call.1} parent=1 // pred_check_branch
      %297 = sbr.rel (0) target = $region21
    $region20: #{tpu_custom_call.1} parent=1 // pred_region
      %s299 = ssub.s32 8192, 8192
      %300 = vsyncadd [#allocation4], %s299
      %s301 = sshll.u32 [#allocation7], 4
      %s302 = int_to_ptr.vmem [resolvable:$true] %s301
      %307 = dma.vmem_to_hbm [thread:$0]  %s302, 8192, %s2, [#allocation4], 256, 256, 16
    $region21: #{tpu_custom_call.1} parent=1 // pred_fallthru
      _
    // Predicated region
    $region22: #{tpu_custom_call.1} parent=1 // pred_check
      _
    $region23: #{tpu_custom_call.1} parent=1 // pred_check_branch
      %309 = sbr.rel (0) target = $region25
    $region24: #{tpu_custom_call.1} parent=1 // pred_region
      %310 = dma.done [#allocation4], 8192
    $region25: #{tpu_custom_call.1} parent=1 // pred_fallthru
      _
    %311 = vsyncpa [#allocation3], 1
    %312 = vsyncpa [#allocation6], 1
    %313 = vsyncpa [#allocation4], 1

</llo_original>
